<compile_context>
chip_gen: v6e
topology: v6e:2x2x1
jax: 0.10.0
libtpu: 0.0.40
codegen_flags: <defaults>
</compile_context>

<pallas_src>
import functools

import jax
import jax.numpy as jnp
from jax.experimental import pallas as pl
from jax.experimental.pallas import tpu as pltpu


_LANES = 128
_SUBLANES = 8
_MAX_TILE_ROWS = 512
_SMALL_VMEM_BYTES = 64 * 1024 * 1024      # v7x-class per-TC VMEM
_MXU_ONES_CAP_BYTES = 8 * 1024 * 1024     # largest (V,128) f32 ones operand we keep resident


def _round_up(x, m):
    return ((x + m - 1) // m) * m


def _device_info():
    """Trace-time TPU generation / VMEM query (with conservative fallbacks)."""
    kind = ""
    try:
        kind = jax.devices()[0].device_kind.lower()
    except Exception:
        pass
    vmem_bytes = None
    try:
        vmem_bytes = int(pltpu.get_tpu_info().vmem_capacity_bytes)
    except Exception:
        pass
    if vmem_bytes is None:
        # v7x has 64 MiB per TensorCore; v5e/v6e have 128 MiB. Conservative when unsure.
        vmem_bytes = _SMALL_VMEM_BYTES if ("7" in kind or not kind) else 128 * 1024 * 1024
    old_gen = any(t in kind for t in ("v2", "v3", "v4", "v5"))
    return vmem_bytes, old_gen


def _choose_tile_rows(n_rows, vocab, itemsize, working_buffer_bytes):
    """Row tile: multiple of sublane packing, bounded by the VMEM working-set budget,
    capped so there are >= 2 grid steps (megacore balance on 2-TC parts)."""
    row_multiple = _SUBLANES * max(1, 4 // itemsize)          # f32: 8, bf16: 16, int8: 32
    budget_rows = max(row_multiple, working_buffer_bytes // (vocab * 4))
    tile = min(_MAX_TILE_ROWS, budget_rows)
    tile = max(row_multiple, (tile // row_multiple) * row_multiple)
    tile = min(tile, _round_up(n_rows, row_multiple))         # don't over-size tiny problems
    # v7x has 2 TensorCores sharing the ("parallel",) grid axis; a 1-tile grid idles one.
    n_blocks = pl.cdiv(_round_up(n_rows, row_multiple), row_multiple)
    if n_blocks >= 2:
        tile = min(tile, row_multiple * ((n_blocks + 1) // 2))
    return tile


def _loss_kernel(x_ref, side_ref, out_ref, *, n_rows, tile_n, use_mxu_rowsum):
    """One row-tile: log-softmax stats + masked reductions -> per-tile partial sums.

    x_ref    : (tile_n, V) logits in their native dtype (streamed, never copied to f32).
    side_ref : (tile_n, 2) f32, lanes [pad_mask, logits[r, target[r]]].
    out_ref  : (1, 8, 128) f32; lanes 0/1/2 of sublane 0 carry
               [sum(nll), sum(-mean_logprob), sum(mask)] for this tile.
    """
    i = pl.program_id(0)
    vocab = x_ref.shape[1]

    # Ragged-tail mask: rows past the real row count hold stale VMEM garbage (no host-side
    # pad). Invalid rows are dropped by *select* (never by multiply), so inf/NaN produced
    # from garbage cannot propagate into the tile sums.
    row = i * tile_n + jax.lax.broadcasted_iota(jnp.int32, (tile_n, 1), 0)
    row_valid = row < n_rows

    # Per-row max on the native-dtype block (exact for comparisons); cast only the result.
    m = jnp.max(x_ref[...], axis=1, keepdims=True).astype(jnp.float32)        # (tile_n, 1)

    # Row reductions: each consumer re-reads x_ref and casts in-expression.
    e = jnp.exp(x_ref[...].astype(jnp.float32) - m)            # (tile_n, V), exp on the EUP
    if use_mxu_rowsum:
        # Offload both row-sums to the otherwise-idle MXU (ones-matmul, fp32 contraction);
        # the VPU is the binding slot for sub-f32 inputs on v6e/v7x.
        ones = jnp.ones((vocab, _LANES), jnp.float32)
        sum_e = jnp.dot(e, ones, precision=jax.lax.Precision.HIGHEST,
                        preferred_element_type=jnp.float32)[:, :1]
        sum_x = jnp.dot(x_ref[...].astype(jnp.float32), ones,
                        precision=jax.lax.Precision.HIGHEST,
                        preferred_element_type=jnp.float32)[:, :1]
    else:
        sum_e = jnp.sum(e, axis=1, keepdims=True)
        sum_x = jnp.sum(x_ref[...].astype(jnp.float32), axis=1, keepdims=True)

    lse = jnp.log(sum_e)                                        # (tile_n, 1)
    mean_x = sum_x * (1.0 / vocab)

    side = side_ref[...]                                        # (tile_n, 2) f32
    msk = side[:, 0:1]
    gathered = side[:, 1:2]                                     # logits[r, target[r]]

    # logprobs[r, c] = x[r, c] - m[r] - lse[r]   (never materialized)
    nll = (lse + m - gathered) * msk                            # -logprob[target] * mask
    # NOTE: intentionally NOT pad-masked -- the reference's (N,)*(N,1) broadcast quirk
    # factors the summed smooth loss as sum(mask) * sum(-mean_logprob); see wrapper.
    neg_mean_lp = lse + m - mean_x                              # -mean(logprobs)

    zero = jnp.zeros_like(lse)
    nll_s = jnp.sum(jnp.where(row_valid, nll, zero))
    smooth_s = jnp.sum(jnp.where(row_valid, neg_mean_lp, zero))
    mask_s = jnp.sum(jnp.where(row_valid, msk, zero))

    lane = jax.lax.broadcasted_iota(jnp.int32, out_ref.shape, 2)
    out_ref[...] = jnp.where(lane == 0, nll_s,
                   jnp.where(lane == 1, smooth_s,
                   jnp.where(lane == 2, mask_s, 0.0)))


@functools.partial(jax.jit, static_argnames=("smoothing", "sequence_normalize",
                                             "sample_normalize"))
def seq_label_smoothing_ce_loss(logits, target, length, *, smoothing=0.1,
                                sequence_normalize=False, sample_normalize=True):
    assert not (sequence_normalize and sample_normalize)
    B, T, V = logits.shape
    N = B * T
    confidence = 1.0 - smoothing

    # get_pad_mask: arange(T) < length (integer compare), as in the module.
    mask = (jnp.arange(T, dtype=jnp.int32)[None, :]
            < length.astype(jnp.int32)[:, None]).astype(jnp.float32)

    x = logits.reshape(N, V)                          # native dtype; no wrapper-wide cast
    tgt = target.reshape(N, 1).astype(jnp.int32)

    # Pre-gather logits[r, target[r]] (XLA gather touching N elements, not N*V); pack it
    # with the pad mask into a single small side input.
    gathered = jnp.take_along_axis(x, tgt, axis=1).astype(jnp.float32)          # (N, 1)
    side = jnp.concatenate([mask.reshape(N, 1), gathered], axis=1)              # (N, 2)

    vmem_bytes, old_gen = _device_info()
    small_vmem = vmem_bytes <= _SMALL_VMEM_BYTES
    working_buffer_bytes = (2 if small_vmem else 8) * 1024 * 1024
    vmem_limit_bytes = (36 if small_vmem else 96) * 1024 * 1024
    # MXU row-sum offload only where the VPU is the binding slot (sub-f32 inputs on
    # non-v5 chips; f32 is already ~HBM-bound) and the (V,128) ones operand fits VMEM.
    use_mxu_rowsum = ((not old_gen) and x.dtype.itemsize < 4
                      and V * _LANES * 4 <= _MXU_ONES_CAP_BYTES)

    tile_n = _choose_tile_rows(N, V, x.dtype.itemsize, working_buffer_bytes)
    num_tiles = pl.cdiv(N, tile_n)

    kernel = functools.partial(_loss_kernel, n_rows=N, tile_n=tile_n,
                               use_mxu_rowsum=use_mxu_rowsum)

    parts = pl.pallas_call(
        kernel,
        out_shape=jax.ShapeDtypeStruct((num_tiles, _SUBLANES, _LANES), jnp.float32),
        grid_spec=pltpu.PrefetchScalarGridSpec(
            num_scalar_prefetch=0,
            grid=(num_tiles,),
            in_specs=[pl.BlockSpec((tile_n, V), lambda i: (i, 0)),
                      pl.BlockSpec((tile_n, 2), lambda i: (i, 0))],
            out_specs=pl.BlockSpec((1, _SUBLANES, _LANES), lambda i: (i, 0, 0)),
        ),
        compiler_params=pltpu.CompilerParams(
            dimension_semantics=("parallel",),
            vmem_limit_bytes=vmem_limit_bytes),
    )(x, side)

    nll_sum = jnp.sum(parts[:, 0, 0])
    smooth_sum = jnp.sum(parts[:, 0, 1])
    mask_sum = jnp.sum(parts[:, 0, 2])

    # Sum over the (N, N) broadcast result of the original PyTorch code:
    #   conf * N * sum_i nll_i + smooth * (sum_i mask_i) * (sum_j -mean_lp_j)
    loss = confidence * jnp.float32(N) * nll_sum + smoothing * mask_sum * smooth_sum
    if sequence_normalize:
        loss = loss / mask_sum
    if sample_normalize:
        loss = loss / jnp.float32(B)
    return loss


def _reference(logits, target, length, smoothing=0.1):
    """Literal pure-JAX transcription of the PyTorch forward (incl. broadcast quirk)."""
    B, T, V = logits.shape
    confidence = 1.0 - smoothing
    mask = (jnp.arange(T)[None, :] < length[:, None]).astype(jnp.float32)
    lp = jax.nn.log_softmax(logits.reshape(-1, V).astype(jnp.float32), axis=1)
    tgt = target.reshape(-1, 1)
    msk = mask.reshape(-1, 1)
    nll = -jnp.take_along_axis(lp, tgt, axis=1) * msk          # (N, 1)
    smooth = -lp.mean(1) * msk                                 # (N,) * (N,1) -> (N,N)
    loss = confidence * nll + smoothing * smooth               # (N, N)
    return jnp.sum(loss) / B


if __name__ == "__main__":
    key = jax.random.PRNGKey(0)
    k1, k2 = jax.random.split(key)

    B, T, V = 2, 8, 32
    logits = jax.random.normal(k1, (B, T, V), dtype=jnp.float32)
    target = jax.random.randint(k2, (B, T), 0, V, dtype=jnp.int32)
    length = jnp.array([5, 8], dtype=jnp.int32)

    loss = seq_label_smoothing_ce_loss(logits, target, length)
    loss = jax.block_until_ready(loss)

    ref = _reference(logits, target, length)
    assert jnp.allclose(loss, ref, rtol=1e-4, atol=1e-4), (loss, ref)

    print("KERNEL_OK")
</pallas_src>

<mosaic_0001>
module attributes {stable_mosaic.version = 11 : i64} {
  func.func @_loss_kernel(%arg0: i32, %arg1: memref<8x32xf32, #tpu.memory_space<vmem>>, %arg2: memref<8x2xf32, #tpu.memory_space<vmem>>, %arg3: memref<1x8x128xf32, #tpu.memory_space<vmem>>) attributes {dimension_semantics = [#tpu.dimension_semantics<parallel>], iteration_bounds = array<i64: 2>, scalar_prefetch = 0 : i64, scratch_operands = 0 : i64, tpu.core_type = #tpu.core_type<tc>, window_params = [{transform_indices = @transform_0, window_bounds = array<i64: 8, 32>}, {transform_indices = @transform_1, window_bounds = array<i64: 8, 2>}, {transform_indices = @transform_2, window_bounds = array<i64: 1, 8, 128>}]} {
    %c8_i32 = arith.constant 8 : i32
    %0 = arith.muli %arg0, %c8_i32 : i32
    %1 = tpu.iota {dimensions = array<i32: 0>} : vector<8x1xi32>
    %2 = vector.broadcast %0 : i32 to vector<8x1xi32>
    %3 = arith.addi %2, %1 : vector<8x1xi32>
    %c16_i32 = arith.constant 16 : i32
    %4 = vector.broadcast %c16_i32 : i32 to vector<8x1xi32>
    %5 = arith.cmpi slt, %3, %4 : vector<8x1xi32>
    %c0 = arith.constant 0 : index
    %c0_0 = arith.constant 0 : index
    %6 = vector.load %arg1[%c0, %c0_0] : memref<8x32xf32, #tpu.memory_space<vmem>>, vector<8x32xf32>
    %cst = arith.constant dense<0xFF800000> : vector<8xf32>
    %7 = vector.multi_reduction <maximumf>, %6, %cst [1] : vector<8x32xf32> to vector<8xf32>
    %8 = vector.shape_cast %7 : vector<8xf32> to vector<8x1xf32>
    %c0_1 = arith.constant 0 : index
    %c0_2 = arith.constant 0 : index
    %9 = vector.load %arg1[%c0_1, %c0_2] : memref<8x32xf32, #tpu.memory_space<vmem>>, vector<8x32xf32>
    %10 = vector.broadcast %8 : vector<8x1xf32> to vector<8x32xf32>
    %11 = arith.subf %9, %10 : vector<8x32xf32>
    %12 = math.exp %11 : vector<8x32xf32>
    %cst_3 = arith.constant dense<0.000000e+00> : vector<8xf32>
    %13 = vector.multi_reduction <add>, %12, %cst_3 [1] : vector<8x32xf32> to vector<8xf32>
    %14 = vector.shape_cast %13 : vector<8xf32> to vector<8x1xf32>
    %c0_4 = arith.constant 0 : index
    %c0_5 = arith.constant 0 : index
    %15 = vector.load %arg1[%c0_4, %c0_5] : memref<8x32xf32, #tpu.memory_space<vmem>>, vector<8x32xf32>
    %cst_6 = arith.constant dense<0.000000e+00> : vector<8xf32>
    %16 = vector.multi_reduction <add>, %15, %cst_6 [1] : vector<8x32xf32> to vector<8xf32>
    %17 = vector.shape_cast %16 : vector<8xf32> to vector<8x1xf32>
    %18 = math.log %14 : vector<8x1xf32>
    %cst_7 = arith.constant 3.125000e-02 : f32
    %19 = vector.broadcast %cst_7 : f32 to vector<8x1xf32>
    %20 = arith.mulf %17, %19 : vector<8x1xf32>
    %c0_8 = arith.constant 0 : index
    %c0_9 = arith.constant 0 : index
    %21 = vector.load %arg2[%c0_8, %c0_9] : memref<8x2xf32, #tpu.memory_space<vmem>>, vector<8x2xf32>
    %22 = vector.extract_strided_slice %21 {offsets = [0, 0], sizes = [8, 1], strides = [1, 1]} : vector<8x2xf32> to vector<8x1xf32>
    %23 = vector.extract_strided_slice %21 {offsets = [0, 1], sizes = [8, 1], strides = [1, 1]} : vector<8x2xf32> to vector<8x1xf32>
    %24 = arith.addf %18, %8 : vector<8x1xf32>
    %25 = arith.subf %24, %23 : vector<8x1xf32>
    %26 = arith.mulf %25, %22 : vector<8x1xf32>
    %27 = arith.addf %18, %8 : vector<8x1xf32>
    %28 = arith.subf %27, %20 : vector<8x1xf32>
    %cst_10 = arith.constant 0.000000e+00 : f32
    %29 = vector.broadcast %cst_10 : f32 to vector<8x1xf32>
    %30 = arith.select %5, %26, %29 : vector<8x1xi1>, vector<8x1xf32>
    %31 = vector.shape_cast %30 : vector<8x1xf32> to vector<1x8x1xf32>
    %cst_11 = arith.constant dense<0.000000e+00> : vector<1xf32>
    %32 = vector.multi_reduction <add>, %31, %cst_11 [1, 2] : vector<1x8x1xf32> to vector<1xf32>
    %33 = vector.shape_cast %32 : vector<1xf32> to vector<1x1x1xf32>
    %34 = vector.extract %33[0, 0, 0] : f32 from vector<1x1x1xf32>
    %35 = arith.select %5, %28, %29 : vector<8x1xi1>, vector<8x1xf32>
    %36 = vector.shape_cast %35 : vector<8x1xf32> to vector<1x8x1xf32>
    %cst_12 = arith.constant dense<0.000000e+00> : vector<1xf32>
    %37 = vector.multi_reduction <add>, %36, %cst_12 [1, 2] : vector<1x8x1xf32> to vector<1xf32>
    %38 = vector.shape_cast %37 : vector<1xf32> to vector<1x1x1xf32>
    %39 = vector.extract %38[0, 0, 0] : f32 from vector<1x1x1xf32>
    %40 = arith.select %5, %22, %29 : vector<8x1xi1>, vector<8x1xf32>
    %41 = vector.shape_cast %40 : vector<8x1xf32> to vector<1x8x1xf32>
    %cst_13 = arith.constant dense<0.000000e+00> : vector<1xf32>
    %42 = vector.multi_reduction <add>, %41, %cst_13 [1, 2] : vector<1x8x1xf32> to vector<1xf32>
    %43 = vector.shape_cast %42 : vector<1xf32> to vector<1x1x1xf32>
    %44 = vector.extract %43[0, 0, 0] : f32 from vector<1x1x1xf32>
    %45 = tpu.iota {dimensions = array<i32: 2>} : vector<1x8x128xi32>
    %c0_i32 = arith.constant 0 : i32
    %46 = vector.broadcast %c0_i32 : i32 to vector<1x8x128xi32>
    %47 = arith.cmpi eq, %45, %46 : vector<1x8x128xi32>
    %c1_i32 = arith.constant 1 : i32
    %48 = vector.broadcast %c1_i32 : i32 to vector<1x8x128xi32>
    %49 = arith.cmpi eq, %45, %48 : vector<1x8x128xi32>
    %c2_i32 = arith.constant 2 : i32
    %50 = vector.broadcast %c2_i32 : i32 to vector<1x8x128xi32>
    %51 = arith.cmpi eq, %45, %50 : vector<1x8x128xi32>
    %cst_14 = arith.constant 0.000000e+00 : f32
    %52 = vector.broadcast %44 : f32 to vector<1x8x128xf32>
    %53 = vector.broadcast %cst_14 : f32 to vector<1x8x128xf32>
    %54 = arith.select %51, %52, %53 : vector<1x8x128xi1>, vector<1x8x128xf32>
    %55 = vector.broadcast %39 : f32 to vector<1x8x128xf32>
    %56 = arith.select %49, %55, %54 : vector<1x8x128xi1>, vector<1x8x128xf32>
    %57 = vector.broadcast %34 : f32 to vector<1x8x128xf32>
    %58 = arith.select %47, %57, %56 : vector<1x8x128xi1>, vector<1x8x128xf32>
    %c0_15 = arith.constant 0 : index
    %c0_16 = arith.constant 0 : index
    %c0_17 = arith.constant 0 : index
    %59 = vector.load %arg3[%c0_15, %c0_16, %c0_17] : memref<1x8x128xf32, #tpu.memory_space<vmem>>, vector<1x8x128xf32>
    tpu.vector_store %arg3[%c0_15, %c0_16, %c0_17], %58 {strides = array<i32>} : memref<1x8x128xf32, #tpu.memory_space<vmem>>, vector<1x8x128xf32>,
    return
  }
  func.func @transform_0(%arg0: i32) -> (i32, i32) {
    %c0_i32 = arith.constant 0 : i32
    %c0_i32_0 = arith.constant 0 : i32
    return %arg0, %c0_i32 : i32, i32
  }
  func.func @transform_1(%arg0: i32) -> (i32, i32) {
    %c0_i32 = arith.constant 0 : i32
    %c0_i32_0 = arith.constant 0 : i32
    return %arg0, %c0_i32 : i32, i32
  }
  func.func @transform_2(%arg0: i32) -> (i32, i32, i32) {
    %c0_i32 = arith.constant 0 : i32
    %c0_i32_0 = arith.constant 0 : i32
    %c0_i32_1 = arith.constant 0 : i32
    return %arg0, %c0_i32, %c0_i32_0 : i32, i32, i32
  }
}

</mosaic_0001>

<llo_original>
// kernel: seq_label_smoothing_ce_loss.1
$region0: #{seq_label_smoothing_ce_loss.1}
  #allocation0 [shape = 'u32[]', space=smem, size = 0x4, offset = 0x4, fixed_abs, tag = 'smem constant byte address 0x4 - core index']
  #allocation1 [shape = 'u32[144,128]{1,0:T(1,128)}', space=vmem, size = 0x12000, scoped, tag = 'internal scratch']
  %s0 = inlined_call_operand.vmem [shape: f32[16,32], index: 0, kind: input, shape index: {}]
  %s1 = inlined_call_operand.vmem [shape: f32[16,2], index: 1, kind: input, shape index: {}]
  %s2 = inlined_call_operand.vmem [shape: f32[2,8,128], index: 2, kind: output, shape index: {}]
  %s3 = sld [smem:[#allocation0]]
  $region41: #{seq_label_smoothing_ce_loss.1} parent=0
    _
  %s5 = ssub.s32 1, %s3
  %s6 = scalar_select 0, %s5, %s3
  loop: start=0, step=1, limit=4
  $region2: #{seq_label_smoothing_ce_loss.1} parent=0 // loop_pre_header
    _
  $region3: #{seq_label_smoothing_ce_loss.1} parent=0 // loop_header
    %s8 = sphi 0, %s12
    %p9 = scmp.ge.s32.totalorder %s8, 4
    %s18 = sphi 0, %s20
    %s21 = sphi 0, %s18
    %s22 = sphi 0, %s21
    %s38 = sphi 0, %s22
    %s44 = sphi 0, %s46
    %s47 = sphi 0, %s44
    %s48 = sphi 0, %s47
    %s64 = sphi 0, %s48
    %s70 = sphi 0, %s72
    %s73 = sphi 0, %s70
    %s74 = sphi 0, %s73
    %s90 = sphi 0, %s74
  $region4: #{seq_label_smoothing_ce_loss.1} parent=0 // loop_header_branch
    %11 = sbr.rel (%p9) target = $region8
  $region5: #{seq_label_smoothing_ce_loss.1} parent=0 // loop_body
    %s13 = ssub.s32 %s8, 1
    %s14 = ssub.s32 %s8, 2
    %s15 = sadd.s32 %s8, 1
    %s16 = ssub.s32 %s8, %s15
    %p17 = scmp.eq.s32.totalorder %s16, 0
    %s19 = sadd.s32 %s18, 1
    %s20 = scalar_select %p17, %s18, %s19
    %p23 = pneg %p17
    %p24 = scmp.eq.s32.totalorder %s8, 1
    %p25 = por %p23, %p24
    %p26 = scmp.ne.s32.totalorder %s18, %s21
    %p27 = scmp.eq.s32.totalorder %s8, 0
    %p28 = por %p26, %p27
    %p29 = scmp.ne.s32.totalorder %s18, %s21
    %p30 = scmp.eq.s32.totalorder %s13, 1
    %p31 = por %p29, %p30
    %p32 = scmp.ne.s32.totalorder %s21, %s22
    %p33 = scmp.eq.s32.totalorder %s13, 0
    %p34 = por %p32, %p33
    %p35 = scmp.ne.s32.totalorder %s21, %s22
    %p36 = scmp.eq.s32.totalorder %s14, 1
    %p37 = por %p35, %p36
    %p39 = scmp.ne.s32.totalorder %s22, %s38
    %p40 = scmp.eq.s32.totalorder %s14, 0
    %p41 = por %p39, %p40
    %s42 = ssub.s32 %s8, %s15
    %p43 = scmp.eq.s32.totalorder %s42, 0
    %s45 = sadd.s32 %s44, 1
    %s46 = scalar_select %p43, %s44, %s45
    %p49 = pneg %p43
    %p50 = scmp.eq.s32.totalorder %s8, 1
    %p51 = por %p49, %p50
    %p52 = scmp.ne.s32.totalorder %s44, %s47
    %p53 = scmp.eq.s32.totalorder %s8, 0
    %p54 = por %p52, %p53
    %p55 = scmp.ne.s32.totalorder %s44, %s47
    %p56 = scmp.eq.s32.totalorder %s13, 1
    %p57 = por %p55, %p56
    %p58 = scmp.ne.s32.totalorder %s47, %s48
    %p59 = scmp.eq.s32.totalorder %s13, 0
    %p60 = por %p58, %p59
    %p61 = scmp.ne.s32.totalorder %s47, %s48
    %p62 = scmp.eq.s32.totalorder %s14, 1
    %p63 = por %p61, %p62
    %p65 = scmp.ne.s32.totalorder %s48, %s64
    %p66 = scmp.eq.s32.totalorder %s14, 0
    %p67 = por %p65, %p66
    %s68 = ssub.s32 %s8, %s15
    %p69 = scmp.eq.s32.totalorder %s68, 0
    %s71 = sadd.s32 %s70, 1
    %s72 = scalar_select %p69, %s70, %s71
    %p75 = pneg %p69
    %p76 = scmp.eq.s32.totalorder %s8, 1
    %p77 = por %p75, %p76
    %p78 = scmp.ne.s32.totalorder %s70, %s73
    %p79 = scmp.eq.s32.totalorder %s8, 0
    %p80 = por %p78, %p79
    %p81 = scmp.ne.s32.totalorder %s70, %s73
    %p82 = scmp.eq.s32.totalorder %s13, 1
    %p83 = por %p81, %p82
    %p84 = scmp.ne.s32.totalorder %s73, %s74
    %p85 = scmp.eq.s32.totalorder %s13, 0
    %p86 = por %p84, %p85
    %p87 = scmp.ne.s32.totalorder %s73, %s74
    %p88 = scmp.eq.s32.totalorder %s14, 1
    %p89 = por %p87, %p88
    %p91 = scmp.ne.s32.totalorder %s74, %s90
    %p92 = scmp.eq.s32.totalorder %s14, 0
    %p93 = por %p91, %p92
    %p94 = scmp.le.s32.totalorder 1, %s8
    %p95 = scmp.lt.s32.totalorder %s8, 3
    %p96 = pnand %p94, %p95
    %p97 = pneg %p96
    // Predicated region
    $region9: #{seq_label_smoothing_ce_loss.1} parent=5 // pred_check
      _
    $region10: #{seq_label_smoothing_ce_loss.1} parent=5 // pred_check_branch
      %99 = sbr.rel (%p96) target = $region12
    $region11: #{seq_label_smoothing_ce_loss.1} parent=5 // pred_region
      %s100 = ssub.s32 %s8, 1
    $region12: #{seq_label_smoothing_ce_loss.1} parent=5 // pred_fallthru
      _
    %p101 = scmp.lt.s32.totalorder %s8, 2
    // Predicated region
    $region13: #{seq_label_smoothing_ce_loss.1} parent=5 // pred_check
      %p102 = pneg %p101
    $region14: #{seq_label_smoothing_ce_loss.1} parent=5 // pred_check_branch
      %104 = sbr.rel (%p102) target = $region16
    $region15: #{seq_label_smoothing_ce_loss.1} parent=5 // pred_region
      // Predicated region
      $region17: #{seq_label_smoothing_ce_loss.1} parent=15 // pred_check
        %p105 = pneg %p28
      $region18: #{seq_label_smoothing_ce_loss.1} parent=15 // pred_check_branch
        %107 = sbr.rel (%p105) target = $region20
      $region19: #{seq_label_smoothing_ce_loss.1} parent=15 // pred_region
        %p108 = scmp.lt.s32.totalorder %s8, 1
        %s109 = scalar_select %p108, %s8, 1
        %s110 = smul.addr %s109, 8
        %s111 = scalar_lea.vmem %s0, %s110
      $region20: #{seq_label_smoothing_ce_loss.1} parent=15 // pred_fallthru
        _
      // Predicated region
      $region21: #{seq_label_smoothing_ce_loss.1} parent=15 // pred_check
        %p112 = pneg %p54
      $region22: #{seq_label_smoothing_ce_loss.1} parent=15 // pred_check_branch
        %114 = sbr.rel (%p112) target = $region24
      $region23: #{seq_label_smoothing_ce_loss.1} parent=15 // pred_region
        %p115 = scmp.lt.s32.totalorder %s8, 1
        %s116 = scalar_select %p115, %s8, 1
        %s117 = smul.addr %s116, 8
        %s118 = scalar_lea.vmem %s1, %s117
      $region24: #{seq_label_smoothing_ce_loss.1} parent=15 // pred_fallthru
        _
    $region16: #{seq_label_smoothing_ce_loss.1} parent=5 // pred_fallthru
      _
    %p119 = scmp.le.s32.totalorder 1, %s8
    %p120 = scmp.lt.s32.totalorder %s8, 3
    %p121 = pnand %p119, %p120
    %p122 = pneg %p121
    // Predicated region
    $region25: #{seq_label_smoothing_ce_loss.1} parent=5 // pred_check
      _
    $region26: #{seq_label_smoothing_ce_loss.1} parent=5 // pred_check_branch
      %124 = sbr.rel (%p121) target = $region28
    $region27: #{seq_label_smoothing_ce_loss.1} parent=5 // pred_region
      %s125 = ssub.s32 %s8, 1
      %p126 = scmp.lt.s32.totalorder %s13, 1
      %s127 = scalar_select %p126, %s13, 1
      %s128 = smul.addr %s127, 8
      %s129 = scalar_lea.vmem %s0, %s128
      %p130 = pneg %p34
      %p131 = pneg %p31
      %p132 = scmp.lt.s32.totalorder %s13, 1
      %s133 = scalar_select %p132, %s13, 1
      %s134 = smul.addr %s133, 8
      %s135 = scalar_lea.vmem %s1, %s134
      %p136 = pneg %p60
      %p137 = pneg %p57
      %p138 = pneg %p86
      %p139 = pneg %p83
      %p140 = scmp.lt.s32.totalorder %s13, 1
      %s141 = scalar_select %p140, %s13, 1
      %s142 = smul.addr %s141, 8
      %s143 = scalar_lea.vmem %s2, %s142
      %p144 = scmp.lt.s32.totalorder %s13, 1
      %s145 = scalar_select %p144, %s13, 1
      %s146 = smul.addr %s145, 8
      %s147 = scalar_lea.vmem %s0, %s146
      %p148 = scmp.lt.s32.totalorder %s13, 1
      %s149 = scalar_select %p148, %s13, 1
      %s150 = smul.addr %s149, 8
      %s151 = scalar_lea.vmem %s1, %s150
      %p152 = scmp.lt.s32.totalorder %s13, 1
      %s153 = scalar_select %p152, %s13, 1
      %s154 = smul.addr %s153, 8
      %s155 = scalar_lea.vmem %s2, %s154
      %s156 = smul.u32 %s13, 8
      %v157 = vlaneseq
      %v158 = vshrl.u32 %v157, 7
      %v159 = vstv %s156
      %v160 = vadd.s32 %v159, %v158
      %vm161 = vcmp.lt.s32.totalorder %v160, 16
      %v162 = vld [vmem:[%s147] sm:$0xff]
      %vm163 = vcmask 261120
      %v164 = vsel %vm163, %v162, -inf
      %165 = vmax.xlane.f32.xlu0 %v164
      %v166 = vpop.xlane.xlu0 %165
      %v167 = vsub.f32 %v162, %v166
      %v168 = vmul.f32 %v167, 1.442695
      %v169 = vpow.pop %v168
      %v170 = vsel %vm163, %v169, 0.0
      %171 = vadd.xlane.f32.xlu0 %v170
      %v172 = vpop.xlane.xlu0 %171
      %v173 = vsel %vm163, %v162, 0.0
      %174 = vadd.xlane.f32.xlu0 %v173
      %v175 = vpop.xlane.xlu0 %174
      %v176 = vlog2.pop %v172
      %v177 = vmul.f32 %v176, 0.6931472
      %v178 = vmul.f32 %v175, 0.03125
      %v179 = vld [vmem:[%s151] sm:$0xff]
      %v180 = vadd.f32 %v177, %v166
      %v181 = vsub.f32 %v180, %v179
      %183 = vrot.lane.b32.xlu0 %v179, 1
      %v184 = vpop.permute.xlu0 %183
      %v186 = vmul.f32 %v181, %v184
      %v187 = vsub.f32 %v180, %v178
      %v188 = vsel %vm161, %v186, 0.0
      %190 = vrot.lane.b32.xlu0 %v188, 127
      %v191 = vpop.permute.xlu0 %190
      %vm193 = vcmask 7168
      %v194 = vsel %vm193, %v191, 0.0
      %195 = vadd.xlane.f32.xlu0 %v194
      %v196 = vpop.xlane.xlu0 %195
      %v197 = vrot.slane %v196, 4
      %v198 = vadd.f32 %v196, %v197
      %v199 = vrot.slane %v198, 2
      %v200 = vadd.f32 %v198, %v199
      %v201 = vrot.slane %v200, 1
      %v202 = vadd.f32 %v200, %v201
      %s203 = vtos %v202
      %v204 = vsel %vm161, %v187, 0.0
      %v205 = vsel %vm193, %v204, 0.0
      %206 = vadd.xlane.f32.xlu0 %v205
      %v207 = vpop.xlane.xlu0 %206
      %v208 = vrot.slane %v207, 4
      %v209 = vadd.f32 %v207, %v208
      %v210 = vrot.slane %v209, 2
      %v211 = vadd.f32 %v209, %v210
      %v212 = vrot.slane %v211, 1
      %v213 = vadd.f32 %v211, %v212
      %s214 = vtos %v213
      %v215 = vsel %vm161, %v179, 0.0
      %v216 = vsel %vm193, %v215, 0.0
      %217 = vadd.xlane.f32.xlu0 %v216
      %v218 = vpop.xlane.xlu0 %217
      %v219 = vrot.slane %v218, 4
      %v220 = vadd.f32 %v218, %v219
      %v221 = vrot.slane %v220, 2
      %v222 = vadd.f32 %v220, %v221
      %v223 = vrot.slane %v222, 1
      %v224 = vadd.f32 %v222, %v223
      %s225 = vtos %v224
      %v226 = vlaneseq
      %v227 = vand.u32 %v226, 127
      %vm228 = vcmp.eq.s32.totalorder %v227, 0
      %vm229 = vcmp.eq.s32.totalorder %v227, 1
      %vm230 = vcmp.eq.s32.totalorder %v227, 2
      %v231 = vstv %s225
      %v232 = vsel %vm230, %v231, 0.0
      %v233 = vstv %s214
      %v234 = vsel %vm229, %v233, %v232
      %v235 = vstv %s203
      %v236 = vsel %vm228, %v235, %v234
      %237 = vst [vmem:[%s155] sm:$0xff] %v236
      %p238 = scmp.lt.s32.totalorder %s13, 1
      %s239 = scalar_select %p238, %s13, 1
      %s240 = smul.addr %s239, 8
      %s241 = scalar_lea.vmem %s2, %s240
      // Predicated region
      $region29: #{seq_label_smoothing_ce_loss.1} parent=27 // pred_check
        %p242 = pneg %p83
      $region30: #{seq_label_smoothing_ce_loss.1} parent=27 // pred_check_branch
        %244 = sbr.rel (%p242) target = $region32
      $region31: #{seq_label_smoothing_ce_loss.1} parent=27 // pred_region
        _
      $region32: #{seq_label_smoothing_ce_loss.1} parent=27 // pred_fallthru
        _
    $region28: #{seq_label_smoothing_ce_loss.1} parent=5 // pred_fallthru
      _
    %p245 = scmp.le.s32.totalorder 2, %s8
    // Predicated region
    $region33: #{seq_label_smoothing_ce_loss.1} parent=5 // pred_check
      %p246 = pneg %p245
    $region34: #{seq_label_smoothing_ce_loss.1} parent=5 // pred_check_branch
      %248 = sbr.rel (%p246) target = $region36
    $region35: #{seq_label_smoothing_ce_loss.1} parent=5 // pred_region
      %s249 = ssub.s32 %s8, 2
      // Predicated region
      $region37: #{seq_label_smoothing_ce_loss.1} parent=35 // pred_check
        %p250 = pneg %p89
      $region38: #{seq_label_smoothing_ce_loss.1} parent=35 // pred_check_branch
        %252 = sbr.rel (%p250) target = $region40
      $region39: #{seq_label_smoothing_ce_loss.1} parent=35 // pred_region
        %p253 = scmp.lt.s32.totalorder %s14, 1
        %s254 = scalar_select %p253, %s14, 1
        %s255 = smul.addr %s254, 8
        %s256 = scalar_lea.vmem %s2, %s255
      $region40: #{seq_label_smoothing_ce_loss.1} parent=35 // pred_fallthru
        _
    $region36: #{seq_label_smoothing_ce_loss.1} parent=5 // pred_fallthru
      _
  $region6: #{seq_label_smoothing_ce_loss.1} parent=0 // loop_footer
    %s12 = sadd.s32 1, %s8
  $region7: #{seq_label_smoothing_ce_loss.1} parent=0 // loop_footer_branch
    %7 = sbr.rel target = $region3
  $region8: #{seq_label_smoothing_ce_loss.1} parent=0 // loop_exit
    _

</llo_original>
